<compile_context>
chip_gen: v5e
topology: v5e:2x2
jax: 0.10.0
libtpu: 0.0.40
codegen_flags: <defaults>
</compile_context>

<pallas_src>
import functools

import jax
import jax.numpy as jnp
from jax.experimental import pallas as pl
from jax.experimental.pallas import tpu as pltpu


def _round_up(x: int, m: int) -> int:
    return (x + m - 1) // m * m


# --------- Pass 1: K-tiled conv matmul + on-chip BN stats -> (scale, shift) ---------

def _conv_stats_kernel(patches_ref, w_ref, gamma_ref, beta_ref,
                       conv_ref, scale_ref, shift_ref,
                       acc_ref, sum_ref, sumsq_ref, *, m_true: int, eps: float):
    i = pl.program_id(0)
    k = pl.program_id(1)
    last_k = k == pl.num_programs(1) - 1

    @pl.when(jnp.logical_and(i == 0, k == 0))
    def _():
        sum_ref[...] = jnp.zeros_like(sum_ref)
        sumsq_ref[...] = jnp.zeros_like(sumsq_ref)

    @pl.when(k == 0)
    def _():
        acc_ref[...] = jnp.zeros_like(acc_ref)

    # bf16 operands, f32 accumulation on the MXU.
    acc_ref[...] += jnp.dot(patches_ref[...], w_ref[...],
                            preferred_element_type=jnp.float32)

    @pl.when(last_k)
    def _():
        conv = acc_ref[...]                              # (TM, C_pad) f32
        # bf16 intermediate store: halves the dominant inter-pass HBM traffic.
        conv_ref[...] = conv.astype(conv_ref.dtype)
        # Per-channel partial reductions from the f32 accumulator (cheap sublane
        # reduction hidden under the MXU). Padded M rows are all-zero -> add 0.
        sum_ref[...] += jnp.sum(conv, axis=0, keepdims=True)
        # TODO(synk): E[x^2]-E[x]^2 in f32 is cancellation-prone when |mean| >> std
        # and M is huge; switch to a shifted/Welford accumulation if that regime
        # matters for this model.
        sumsq_ref[...] += jnp.sum(conv * conv, axis=0, keepdims=True)

    @pl.when(jnp.logical_and(last_k, i == pl.num_programs(0) - 1))
    def _():
        inv_m = 1.0 / float(m_true)
        mean = sum_ref[...] * inv_m
        var = sumsq_ref[...] * inv_m - mean * mean       # biased var (BN training fwd)
        inv_std = jax.lax.rsqrt(var + eps)
        scale = gamma_ref[...] * inv_std                 # fold BN affine
        scale_ref[...] = scale
        shift_ref[...] = beta_ref[...] - mean * scale


# --------- Pass 2: streaming y = conv*scale + shift, then LeakyReLU -----------------

def _bn_lrelu_kernel(conv_ref, scale_ref, shift_ref, o_ref, *, negative_slope: float):
    y = conv_ref[...].astype(jnp.float32) * scale_ref[...] + shift_ref[...]
    o_ref[...] = jnp.where(y >= 0, y, negative_slope * y).astype(o_ref.dtype)


def discriminator_block(x_nchw, weight_oihw, gamma, beta,
                        negative_slope: float = 0.2, eps: float = 1e-5):
    """x_nchw: (B, Cin, H, W) f32. weight_oihw: (Cout, Cin, 4, 4) f32."""
    B, Cin, H, W = x_nchw.shape
    Cout = weight_oihw.shape[0]
    KH = KW = 4
    stride = 2
    Ho = (H + 2 - KH) // stride + 1
    Wo = (W + 2 - KW) // stride + 1

    # ---- glue: im2col patch extraction, done fully in bf16 (cast first so every
    # intermediate copy XLA materializes is half-width) ----
    # TODO(synk): fuse the 4x4/stride-2 patch extraction into pass 1 (manual halo
    # DMA from an NHWC HBM ref or strided in-kernel slices) to remove this HBM
    # materialization entirely; it is the remaining dominant traffic term for
    # large H*W discriminator inputs.
    x_nhwc = jnp.transpose(x_nchw.astype(jnp.bfloat16), (0, 2, 3, 1))  # (B,H,W,Cin)
    x_pad = jnp.pad(x_nhwc, ((0, 0), (1, 1), (1, 1), (0, 0)))
    taps = []
    for kh in range(KH):
        for kw in range(KW):
            taps.append(x_pad[:, kh:kh + stride * Ho:stride,
                                 kw:kw + stride * Wo:stride, :])       # (B,Ho,Wo,Cin)
    # K flatten order = (cin, kh, kw) to match OIHW weight flattening.
    patches = jnp.stack(taps, axis=-1).reshape(B * Ho * Wo, Cin * KH * KW)
    w2 = weight_oihw.reshape(Cout, Cin * KH * KW).T.astype(jnp.bfloat16)  # (K, Cout)

    M, K = patches.shape
    C_pad = _round_up(Cout, 128)

    # K tiling keeps the pass-1 working set bounded independent of Cin (important
    # for v7x's 64 MiB VMEM / TC); K is padded so TK | K_pad (zero pads are inert).
    K_pad = _round_up(K, 128)
    TK = min(512, K_pad)
    K_pad = _round_up(K_pad, TK)
    grid_k = K_pad // TK

    # M tiling: multiples of 16 (native bf16 (16,128) sublane packing). Pass 2 is
    # pure streaming with trivial VPU work, so it gets a larger independent tile.
    if M <= 1024:
        TM = TM2 = _round_up(M, 16)
    else:
        TM, TM2 = 1024, 2048
    M_pad = _round_up(M, max(TM, TM2))
    grid_m = M_pad // TM
    grid_m2 = M_pad // TM2

    patches = jnp.pad(patches, ((0, M_pad - M), (0, K_pad - K)))
    w2 = jnp.pad(w2, ((0, K_pad - K), (0, C_pad - Cout)))
    gamma_p = jnp.pad(gamma.astype(jnp.float32), (0, C_pad - Cout),
                      constant_values=1.0).reshape(1, C_pad)
    beta_p = jnp.pad(beta.astype(jnp.float32), (0, C_pad - Cout)).reshape(1, C_pad)

    # 48 MiB scoped VMEM: safe on v7x (64 MiB physical per TC) and comfortable on
    # v5e/v6e (128 MiB) for the tile sizes above (<~25 MiB worst-case working set).
    vmem_limit = 48 * 1024 * 1024
    cparams_seq = pltpu.CompilerParams(
        dimension_semantics=("arbitrary", "arbitrary"),
        vmem_limit_bytes=vmem_limit)
    cparams_par = pltpu.CompilerParams(
        dimension_semantics=("parallel",),
        vmem_limit_bytes=vmem_limit)

    # ---- pass 1: conv tiles (bf16) + folded BN (scale, shift) ----
    # TODO(synk): on v7x, add a leading core-parallel M split with per-core partial
    # sum/sumsq rows combined in the wrapper so both TensorCores drive the MXU.
    conv, scale, shift = pl.pallas_call(
        functools.partial(_conv_stats_kernel, m_true=M, eps=eps),
        out_shape=(jax.ShapeDtypeStruct((M_pad, C_pad), jnp.bfloat16),
                   jax.ShapeDtypeStruct((1, C_pad), jnp.float32),
                   jax.ShapeDtypeStruct((1, C_pad), jnp.float32)),
        grid=(grid_m, grid_k),
        in_specs=[
            pl.BlockSpec((TM, TK), lambda i, k: (i, k)),       # patches tile
            pl.BlockSpec((TK, C_pad), lambda i, k: (k, 0)),    # weight K-slab
            pl.BlockSpec((1, C_pad), lambda i, k: (0, 0)),     # gamma (resident)
            pl.BlockSpec((1, C_pad), lambda i, k: (0, 0)),     # beta (resident)
        ],
        out_specs=(
            pl.BlockSpec((TM, C_pad), lambda i, k: (i, 0)),    # conv tile (bf16)
            pl.BlockSpec((1, C_pad), lambda i, k: (0, 0)),     # scale (resident)
            pl.BlockSpec((1, C_pad), lambda i, k: (0, 0)),     # shift (resident)
        ),
        scratch_shapes=[pltpu.VMEM((TM, C_pad), jnp.float32),  # f32 K-accumulator
                        pltpu.VMEM((1, C_pad), jnp.float32),   # running sum
                        pltpu.VMEM((1, C_pad), jnp.float32)],  # running sum of squares
        compiler_params=cparams_seq,
    )(patches, w2, gamma_p, beta_p)

    # ---- pass 2: y = conv*scale + shift, LeakyReLU; fully parallel over M tiles ----
    out_flat = pl.pallas_call(
        functools.partial(_bn_lrelu_kernel, negative_slope=negative_slope),
        out_shape=jax.ShapeDtypeStruct((M_pad, C_pad), jnp.float32),
        grid=(grid_m2,),
        in_specs=[
            pl.BlockSpec((TM2, C_pad), lambda i: (i, 0)),
            pl.BlockSpec((1, C_pad), lambda i: (0, 0)),
            pl.BlockSpec((1, C_pad), lambda i: (0, 0)),
        ],
        out_specs=pl.BlockSpec((TM2, C_pad), lambda i: (i, 0)),
        compiler_params=cparams_par,
    )(conv, scale, shift)

    # strip padding, back to NCHW
    out = out_flat[:M, :Cout].reshape(B, Ho, Wo, Cout)
    return jnp.transpose(out, (0, 3, 1, 2))


def _reference(x_nchw, weight_oihw, gamma, beta, negative_slope=0.2, eps=1e-5,
               mirror_kernel=True):
    # mirror_kernel=True mirrors the kernel's precision contract: bf16 MXU operands,
    # f32 accumulation, BN stats from the f32 conv, bf16-rounded conv intermediate,
    # folded scale/shift epilogue. mirror_kernel=False is pure-f32 PyTorch semantics.
    if mirror_kernel:
        x_c = x_nchw.astype(jnp.bfloat16).astype(jnp.float32)
        w_c = weight_oihw.astype(jnp.bfloat16).astype(jnp.float32)
    else:
        x_c, w_c = x_nchw, weight_oihw
    conv = jax.lax.conv_general_dilated(
        x_c, w_c, window_strides=(2, 2), padding=((1, 1), (1, 1)),
        dimension_numbers=("NCHW", "OIHW", "NCHW"),
        precision=jax.lax.Precision.HIGHEST)
    mean = conv.mean(axis=(0, 2, 3), keepdims=True)
    var = conv.var(axis=(0, 2, 3), keepdims=True)    # biased, like BN training fwd
    inv_std = 1.0 / jnp.sqrt(var + eps)
    scale = gamma.reshape(1, -1, 1, 1) * inv_std
    shift = beta.reshape(1, -1, 1, 1) - mean * scale
    if mirror_kernel:
        conv = conv.astype(jnp.bfloat16).astype(jnp.float32)
    y = conv * scale + shift
    return jnp.where(y >= 0, y, negative_slope * y)


if __name__ == "__main__":
    B, Cin, Cout, H, W = 2, 4, 8, 16, 16
    key = jax.random.PRNGKey(0)
    kx, kw = jax.random.split(key)

    x = jax.random.normal(kx, (B, Cin, H, W), dtype=jnp.float32)
    # deterministic conv weight init (no bias, per module)
    weight = 0.05 * jax.random.normal(kw, (Cout, Cin, 4, 4), dtype=jnp.float32)
    # BatchNorm2d default affine init: weight=1, bias=0
    gamma = jnp.ones((Cout,), dtype=jnp.float32)
    beta = jnp.zeros((Cout,), dtype=jnp.float32)

    out = jax.block_until_ready(discriminator_block(x, weight, gamma, beta))
    assert out.shape == (B, Cout, H // 2, W // 2)

    # Mirror-precision check (same bf16 operand + bf16-intermediate contract as the
    # kernel; tolerance covers rare 1-ulp bf16 rounding flips between conv paths).
    ref_mirror = _reference(x, weight, gamma, beta, mirror_kernel=True)
    assert jnp.allclose(out, ref_mirror, atol=1e-2, rtol=1e-2), \
        float(jnp.max(jnp.abs(out - ref_mirror)))

    # Sanity check vs the pure-f32 module semantics (tolerance covers bf16 rounding).
    ref_f32 = _reference(x, weight, gamma, beta, mirror_kernel=False)
    assert jnp.allclose(out, ref_f32, atol=5e-2, rtol=5e-2), \
        float(jnp.max(jnp.abs(out - ref_f32)))

    print("KERNEL_OK")
</pallas_src>

<mosaic_0001>
module attributes {stable_mosaic.version = 11 : i64} {
  func.func @_conv_stats_kernel(%arg0: i32, %arg1: i32, %arg2: memref<128x128xbf16, #tpu.memory_space<vmem>>, %arg3: memref<128x128xbf16, #tpu.memory_space<vmem>>, %arg4: memref<1x128xf32, #tpu.memory_space<vmem>>, %arg5: memref<1x128xf32, #tpu.memory_space<vmem>>, %arg6: memref<128x128xbf16, #tpu.memory_space<vmem>>, %arg7: memref<1x128xf32, #tpu.memory_space<vmem>>, %arg8: memref<1x128xf32, #tpu.memory_space<vmem>>, %arg9: memref<128x128xf32, #tpu.memory_space<vmem>>, %arg10: memref<1x128xf32, #tpu.memory_space<vmem>>, %arg11: memref<1x128xf32, #tpu.memory_space<vmem>>) attributes {dimension_semantics = [#tpu.dimension_semantics<arbitrary>, #tpu.dimension_semantics<arbitrary>], iteration_bounds = array<i64: 1, 1>, scalar_prefetch = 0 : i64, scratch_operands = 3 : i64, tpu.core_type = #tpu.core_type<tc>, window_params = [{transform_indices = @transform_0, window_bounds = array<i64: 128, 128>}, {transform_indices = @transform_1, window_bounds = array<i64: 128, 128>}, {pipeline_mode = #tpu.pipeline_mode<synchronous>, transform_indices = @transform_2, window_bounds = array<i64: 1, 128>}, {pipeline_mode = #tpu.pipeline_mode<synchronous>, transform_indices = @transform_3, window_bounds = array<i64: 1, 128>}, {transform_indices = @transform_4, window_bounds = array<i64: 128, 128>}, {pipeline_mode = #tpu.pipeline_mode<synchronous>, transform_indices = @transform_5, window_bounds = array<i64: 1, 128>}, {pipeline_mode = #tpu.pipeline_mode<synchronous>, transform_indices = @transform_6, window_bounds = array<i64: 1, 128>}]} {
    %c0_i32 = arith.constant 0 : i32
    %0 = arith.cmpi eq, %arg1, %c0_i32 : i32
    %c0_i32_0 = arith.constant 0 : i32
    %1 = arith.cmpi eq, %arg0, %c0_i32_0 : i32
    %c0_i32_1 = arith.constant 0 : i32
    %2 = arith.cmpi eq, %arg1, %c0_i32_1 : i32
    %3 = arith.andi %1, %2 : i1
    %4 = arith.extui %3 : i1 to i32
    %c0_i32_2 = arith.constant 0 : i32
    %5 = arith.cmpi ne, %4, %c0_i32_2 : i32
    scf.if %5 {
      %cst_15 = arith.constant 0.000000e+00 : f32
      %21 = vector.broadcast %cst_15 : f32 to vector<1x128xf32>
      %c0_16 = arith.constant 0 : index
      %c0_17 = arith.constant 0 : index
      %22 = vector.load %arg10[%c0_16, %c0_17] : memref<1x128xf32, #tpu.memory_space<vmem>>, vector<1x128xf32>
      tpu.vector_store %arg10[%c0_16, %c0_17], %21 {strides = array<i32>} : memref<1x128xf32, #tpu.memory_space<vmem>>, vector<1x128xf32>,
      %cst_18 = arith.constant 0.000000e+00 : f32
      %23 = vector.broadcast %cst_18 : f32 to vector<1x128xf32>
      %c0_19 = arith.constant 0 : index
      %c0_20 = arith.constant 0 : index
      %24 = vector.load %arg11[%c0_19, %c0_20] : memref<1x128xf32, #tpu.memory_space<vmem>>, vector<1x128xf32>
      tpu.vector_store %arg11[%c0_19, %c0_20], %23 {strides = array<i32>} : memref<1x128xf32, #tpu.memory_space<vmem>>, vector<1x128xf32>,
    } else {
    }
    %c0_i32_3 = arith.constant 0 : i32
    %6 = arith.cmpi eq, %arg1, %c0_i32_3 : i32
    %7 = arith.extui %6 : i1 to i32
    %c0_i32_4 = arith.constant 0 : i32
    %8 = arith.cmpi ne, %7, %c0_i32_4 : i32
    scf.if %8 {
      %cst_15 = arith.constant 0.000000e+00 : f32
      %21 = vector.broadcast %cst_15 : f32 to vector<128x128xf32>
      %c0_16 = arith.constant 0 : index
      %c0_17 = arith.constant 0 : index
      %22 = vector.load %arg9[%c0_16, %c0_17] : memref<128x128xf32, #tpu.memory_space<vmem>>, vector<128x128xf32>
      tpu.vector_store %arg9[%c0_16, %c0_17], %21 {strides = array<i32>} : memref<128x128xf32, #tpu.memory_space<vmem>>, vector<128x128xf32>,
    } else {
    }
    %c0 = arith.constant 0 : index
    %c0_5 = arith.constant 0 : index
    %9 = vector.load %arg9[%c0, %c0_5] : memref<128x128xf32, #tpu.memory_space<vmem>>, vector<128x128xf32>
    %c0_6 = arith.constant 0 : index
    %c0_7 = arith.constant 0 : index
    %10 = vector.load %arg2[%c0_6, %c0_7] : memref<128x128xbf16, #tpu.memory_space<vmem>>, vector<128x128xbf16>
    %c0_8 = arith.constant 0 : index
    %c0_9 = arith.constant 0 : index
    %11 = vector.load %arg3[%c0_8, %c0_9] : memref<128x128xbf16, #tpu.memory_space<vmem>>, vector<128x128xbf16>
    %cst = arith.constant dense<0.000000e+00> : vector<128x128xf32>
    %12 = tpu.matmul %10, %11, %cst {dimension_numbers = #tpu.dot_dimension_numbers<[1], [0], [0], [1], [0, 0, 1, 1], [], []>} : vector<128x128xbf16>, vector<128x128xbf16>, vector<128x128xf32> -> vector<128x128xf32>
    %13 = arith.addf %9, %12 : vector<128x128xf32>
    %c0_10 = arith.constant 0 : index
    %c0_11 = arith.constant 0 : index
    %14 = vector.load %arg9[%c0_10, %c0_11] : memref<128x128xf32, #tpu.memory_space<vmem>>, vector<128x128xf32>
    tpu.vector_store %arg9[%c0_10, %c0_11], %13 {strides = array<i32>} : memref<128x128xf32, #tpu.memory_space<vmem>>, vector<128x128xf32>,
    %15 = arith.extui %0 : i1 to i32
    %c0_i32_12 = arith.constant 0 : i32
    %16 = arith.cmpi ne, %15, %c0_i32_12 : i32
    scf.if %16 {
      %c0_15 = arith.constant 0 : index
      %c0_16 = arith.constant 0 : index
      %21 = vector.load %arg9[%c0_15, %c0_16] : memref<128x128xf32, #tpu.memory_space<vmem>>, vector<128x128xf32>
      %22 = arith.truncf %21 : vector<128x128xf32> to vector<128x128xbf16>
      %c0_17 = arith.constant 0 : index
      %c0_18 = arith.constant 0 : index
      %23 = vector.load %arg6[%c0_17, %c0_18] : memref<128x128xbf16, #tpu.memory_space<vmem>>, vector<128x128xbf16>
      tpu.vector_store %arg6[%c0_17, %c0_18], %22 {strides = array<i32>} : memref<128x128xbf16, #tpu.memory_space<vmem>>, vector<128x128xbf16>,
      %c0_19 = arith.constant 0 : index
      %c0_20 = arith.constant 0 : index
      %24 = vector.load %arg10[%c0_19, %c0_20] : memref<1x128xf32, #tpu.memory_space<vmem>>, vector<1x128xf32>
      %cst_21 = arith.constant dense<0.000000e+00> : vector<128xf32>
      %25 = vector.multi_reduction <add>, %21, %cst_21 [0] : vector<128x128xf32> to vector<128xf32>
      %26 = vector.shape_cast %25 : vector<128xf32> to vector<1x128xf32>
      %27 = arith.addf %24, %26 : vector<1x128xf32>
      %c0_22 = arith.constant 0 : index
      %c0_23 = arith.constant 0 : index
      %28 = vector.load %arg10[%c0_22, %c0_23] : memref<1x128xf32, #tpu.memory_space<vmem>>, vector<1x128xf32>
      tpu.vector_store %arg10[%c0_22, %c0_23], %27 {strides = array<i32>} : memref<1x128xf32, #tpu.memory_space<vmem>>, vector<1x128xf32>,
      %c0_24 = arith.constant 0 : index
      %c0_25 = arith.constant 0 : index
      %29 = vector.load %arg11[%c0_24, %c0_25] : memref<1x128xf32, #tpu.memory_space<vmem>>, vector<1x128xf32>
      %30 = arith.mulf %21, %21 : vector<128x128xf32>
      %cst_26 = arith.constant dense<0.000000e+00> : vector<128xf32>
      %31 = vector.multi_reduction <add>, %30, %cst_26 [0] : vector<128x128xf32> to vector<128xf32>
      %32 = vector.shape_cast %31 : vector<128xf32> to vector<1x128xf32>
      %33 = arith.addf %29, %32 : vector<1x128xf32>
      %c0_27 = arith.constant 0 : index
      %c0_28 = arith.constant 0 : index
      %34 = vector.load %arg11[%c0_27, %c0_28] : memref<1x128xf32, #tpu.memory_space<vmem>>, vector<1x128xf32>
      tpu.vector_store %arg11[%c0_27, %c0_28], %33 {strides = array<i32>} : memref<1x128xf32, #tpu.memory_space<vmem>>, vector<1x128xf32>,
    } else {
    }
    %c0_i32_13 = arith.constant 0 : i32
    %17 = arith.cmpi eq, %arg0, %c0_i32_13 : i32
    %18 = arith.andi %0, %17 : i1
    %19 = arith.extui %18 : i1 to i32
    %c0_i32_14 = arith.constant 0 : i32
    %20 = arith.cmpi ne, %19, %c0_i32_14 : i32
    scf.if %20 {
      %c0_15 = arith.constant 0 : index
      %c0_16 = arith.constant 0 : index
      %21 = vector.load %arg10[%c0_15, %c0_16] : memref<1x128xf32, #tpu.memory_space<vmem>>, vector<1x128xf32>
      %cst_17 = arith.constant 7.812500e-03 : f32
      %22 = vector.broadcast %cst_17 : f32 to vector<1x128xf32>
      %23 = arith.mulf %21, %22 : vector<1x128xf32>
      %c0_18 = arith.constant 0 : index
      %c0_19 = arith.constant 0 : index
      %24 = vector.load %arg11[%c0_18, %c0_19] : memref<1x128xf32, #tpu.memory_space<vmem>>, vector<1x128xf32>
      %cst_20 = arith.constant 7.812500e-03 : f32
      %25 = vector.broadcast %cst_20 : f32 to vector<1x128xf32>
      %26 = arith.mulf %24, %25 : vector<1x128xf32>
      %27 = arith.mulf %23, %23 : vector<1x128xf32>
      %28 = arith.subf %26, %27 : vector<1x128xf32>
      %cst_21 = arith.constant 9.99999974E-6 : f32
      %29 = vector.broadcast %cst_21 : f32 to vector<1x128xf32>
      %30 = arith.addf %28, %29 : vector<1x128xf32>
      %31 = math.rsqrt %30 : vector<1x128xf32>
      %c0_22 = arith.constant 0 : index
      %c0_23 = arith.constant 0 : index
      %32 = vector.load %arg4[%c0_22, %c0_23] : memref<1x128xf32, #tpu.memory_space<vmem>>, vector<1x128xf32>
      %33 = arith.mulf %32, %31 : vector<1x128xf32>
      %c0_24 = arith.constant 0 : index
      %c0_25 = arith.constant 0 : index
      %34 = vector.load %arg7[%c0_24, %c0_25] : memref<1x128xf32, #tpu.memory_space<vmem>>, vector<1x128xf32>
      tpu.vector_store %arg7[%c0_24, %c0_25], %33 {strides = array<i32>} : memref<1x128xf32, #tpu.memory_space<vmem>>, vector<1x128xf32>,
      %c0_26 = arith.constant 0 : index
      %c0_27 = arith.constant 0 : index
      %35 = vector.load %arg5[%c0_26, %c0_27] : memref<1x128xf32, #tpu.memory_space<vmem>>, vector<1x128xf32>
      %36 = arith.mulf %23, %33 : vector<1x128xf32>
      %37 = arith.subf %35, %36 : vector<1x128xf32>
      %c0_28 = arith.constant 0 : index
      %c0_29 = arith.constant 0 : index
      %38 = vector.load %arg8[%c0_28, %c0_29] : memref<1x128xf32, #tpu.memory_space<vmem>>, vector<1x128xf32>
      tpu.vector_store %arg8[%c0_28, %c0_29], %37 {strides = array<i32>} : memref<1x128xf32, #tpu.memory_space<vmem>>, vector<1x128xf32>,
    } else {
    }
    return
  }
  func.func @transform_0(%arg0: i32, %arg1: i32) -> (i32, i32) {
    %c0_i32 = arith.constant 0 : i32
    return %arg0, %arg1 : i32, i32
  }
  func.func @transform_1(%arg0: i32, %arg1: i32) -> (i32, i32) {
    %c0_i32 = arith.constant 0 : i32
    %c0_i32_0 = arith.constant 0 : i32
    return %arg1, %c0_i32 : i32, i32
  }
  func.func @transform_2(%arg0: i32, %arg1: i32) -> (i32, i32) {
    %c0_i32 = arith.constant 0 : i32
    %c0_i32_0 = arith.constant 0 : i32
    %c0_i32_1 = arith.constant 0 : i32
    return %c0_i32, %c0_i32_0 : i32, i32
  }
  func.func @transform_3(%arg0: i32, %arg1: i32) -> (i32, i32) {
    %c0_i32 = arith.constant 0 : i32
    %c0_i32_0 = arith.constant 0 : i32
    %c0_i32_1 = arith.constant 0 : i32
    return %c0_i32, %c0_i32_0 : i32, i32
  }
  func.func @transform_4(%arg0: i32, %arg1: i32) -> (i32, i32) {
    %c0_i32 = arith.constant 0 : i32
    %c0_i32_0 = arith.constant 0 : i32
    return %arg0, %c0_i32 : i32, i32
  }
  func.func @transform_5(%arg0: i32, %arg1: i32) -> (i32, i32) {
    %c0_i32 = arith.constant 0 : i32
    %c0_i32_0 = arith.constant 0 : i32
    %c0_i32_1 = arith.constant 0 : i32
    return %c0_i32, %c0_i32_0 : i32, i32
  }
  func.func @transform_6(%arg0: i32, %arg1: i32) -> (i32, i32) {
    %c0_i32 = arith.constant 0 : i32
    %c0_i32_0 = arith.constant 0 : i32
    %c0_i32_1 = arith.constant 0 : i32
    return %c0_i32, %c0_i32_0 : i32, i32
  }
}

</mosaic_0001>

<llo_original>
// kernel: tpu_custom_call.1
$region0: #{tpu_custom_call.1}
  #allocation0 [shape = 'u32[]', space=smem, size = 0x4, offset = 0x4, fixed_abs, tag = 'smem constant byte address 0x4 - core index']
  #allocation1 [shape = 'u32[72,128]{1,0:T(1,128)}', space=vmem, size = 0x9000, scoped, tag = 'internal scratch']
  #allocation2 [shape = 'f32[128,128]{1,0:T(8,128)}', space=vmem, size = 0x10000, scoped, tag = 'scratch operand']
  #allocation3 [shape = 'f32[1,128]{1,0:T(1,128)}', space=vmem, size = 0x200, scoped, tag = 'scratch operand']
  #allocation4 [shape = 'f32[1,128]{1,0:T(1,128)}', space=vmem, size = 0x200, scoped, tag = 'scratch operand']
  %s0 = inlined_call_operand.hbm [shape: bf16[128,128], index: 0, kind: input, shape index: {}]
  %s1 = inlined_call_operand.hbm [shape: bf16[128,128], index: 1, kind: input, shape index: {}]
  %s2 = inlined_call_operand.vmem [shape: f32[1,128], index: 2, kind: input, shape index: {}]
  %s3 = inlined_call_operand.vmem [shape: f32[1,128], index: 3, kind: input, shape index: {}]
  %s4 = inlined_call_operand.hbm [shape: bf16[128,128], index: 4, kind: output, shape index: {0}]
  %s5 = inlined_call_operand.hbm [shape: f32[1,128], index: 5, kind: output, shape index: {1}]
  %s6 = inlined_call_operand.hbm [shape: f32[1,128], index: 6, kind: output, shape index: {2}]
  %7 = xla_tuple %s4, %s5, %s6
  %s8 = sld [smem:[#allocation0]]
  $region66: #{tpu_custom_call.1} parent=0
    _
  %s10 = ssub.s32 1, %s8
  %s11 = scalar_select 0, %s10, %s8
  $region1: #{tpu_custom_call.1} parent=0
    #allocation5 [shape = 'u8[32768]{0}', space=vmem, size = 0x8000, scoped, tag = 'input window, operand 0, single buffered']
    #allocation6 [shape = 's32[1]{0}', space=sflag, size = 0x4, scoped, tag = 'scoped memory for tpu_custom_call.1']
    #allocation7 [shape = 's32[1]{0}', space=sflag, size = 0x4, scoped, tag = 'scoped memory for tpu_custom_call.1']
    #allocation8 [shape = 'u8[32768]{0}', space=vmem, size = 0x8000, scoped, tag = 'input window, operand 1, single buffered']
    #allocation9 [shape = 's32[1]{0}', space=sflag, size = 0x4, scoped, tag = 'scoped memory for tpu_custom_call.1']
    #allocation10 [shape = 'u8[32768]{0}', space=vmem, size = 0x8000, scoped, tag = 'output window, operand 0, single buffered']
    #allocation11 [shape = 'u8[512]{0}', space=vmem, size = 0x400, scoped, tag = 'output window, operand 1, single buffered']
    #allocation12 [shape = 's32[1]{0}', space=sflag, size = 0x4, scoped, tag = 'scoped memory for tpu_custom_call.1']
    #allocation13 [shape = 'u8[512]{0}', space=vmem, size = 0x400, scoped, tag = 'output window, operand 2, single buffered']
    %12 = vsyncpa [#allocation6], 0
    %13 = vsyncpa [#allocation9], 0
    %14 = vsyncpa [#allocation7], 0
    %15 = vsyncpa [#allocation12], 0
    // Predicated region
    $region2: #{tpu_custom_call.1} parent=1 // pred_check
      _
    $region3: #{tpu_custom_call.1} parent=1 // pred_check_branch
      %17 = sbr.rel (0) target = $region5
    $region4: #{tpu_custom_call.1} parent=1 // pred_region
      %19 = vsyncadd [#allocation6], 0
      %s20 = sshll.u32 %s0, 4
      %s21 = int_to_ptr.hbm [resolvable:$true] %s20
      %s22 = sshll.u32 [#allocation5], 4
      %s23 = int_to_ptr.vmem [resolvable:$true] %s22
      %28 = dma.hbm_to_vmem [thread:$0]  %s21, 1024, %s23, [#allocation6], 64, 64, 4
    $region5: #{tpu_custom_call.1} parent=1 // pred_fallthru
      _
    // Predicated region
    $region6: #{tpu_custom_call.1} parent=1 // pred_check
      _
    $region7: #{tpu_custom_call.1} parent=1 // pred_check_branch
      %30 = sbr.rel (0) target = $region9
    $region8: #{tpu_custom_call.1} parent=1 // pred_region
      %32 = vsyncadd [#allocation9], 0
      %s33 = sshll.u32 %s1, 4
      %s34 = int_to_ptr.hbm [resolvable:$true] %s33
      %s35 = sshll.u32 [#allocation8], 4
      %s36 = int_to_ptr.vmem [resolvable:$true] %s35
      %41 = dma.hbm_to_vmem [thread:$0]  %s34, 1024, %s36, [#allocation9], 64, 64, 4
    $region9: #{tpu_custom_call.1} parent=1 // pred_fallthru
      _
    // Predicated region
    $region10: #{tpu_custom_call.1} parent=1 // pred_check
      _
    $region11: #{tpu_custom_call.1} parent=1 // pred_check_branch
      %43 = sbr.rel (0) target = $region13
    $region12: #{tpu_custom_call.1} parent=1 // pred_region
      _
    $region13: #{tpu_custom_call.1} parent=1 // pred_fallthru
      _
    // Predicated region
    $region14: #{tpu_custom_call.1} parent=1 // pred_check
      _
    $region15: #{tpu_custom_call.1} parent=1 // pred_check_branch
      %45 = sbr.rel (0) target = $region17
    $region16: #{tpu_custom_call.1} parent=1 // pred_region
      _
    $region17: #{tpu_custom_call.1} parent=1 // pred_fallthru
      _
    // Predicated region
    $region18: #{tpu_custom_call.1} parent=1 // pred_check
      _
    $region19: #{tpu_custom_call.1} parent=1 // pred_check_branch
      %47 = sbr.rel (0) target = $region21
    $region20: #{tpu_custom_call.1} parent=1 // pred_region
      %49 = dma.done [#allocation6], 1024
    $region21: #{tpu_custom_call.1} parent=1 // pred_fallthru
      _
    // Predicated region
    $region22: #{tpu_custom_call.1} parent=1 // pred_check
      _
    $region23: #{tpu_custom_call.1} parent=1 // pred_check_branch
      %51 = sbr.rel (0) target = $region25
    $region24: #{tpu_custom_call.1} parent=1 // pred_region
      %53 = dma.done [#allocation9], 1024
    $region25: #{tpu_custom_call.1} parent=1 // pred_fallthru
      _
    %p54 = scmp.eq.s32.totalorder 0, 0
    %p55 = scmp.eq.s32.totalorder 0, 0
    %p56 = pnand %p55, %p54
    %p57 = pneg %p56
    // Predicated region
    $region26: #{tpu_custom_call.1} parent=1 // pred_check
      _
    $region27: #{tpu_custom_call.1} parent=1 // pred_check_branch
      %59 = sbr.rel (%p56) target = $region29
    $region28: #{tpu_custom_call.1} parent=1 // pred_region
      %60 = vst [vmem:[#allocation3] sm:$0x1] 0.0
      %61 = vst [vmem:[#allocation4] sm:$0x1] 0.0
    $region29: #{tpu_custom_call.1} parent=1 // pred_fallthru
      _
    // Predicated region
    $region30: #{tpu_custom_call.1} parent=1 // pred_check
      %p62 = pneg %p54
    $region31: #{tpu_custom_call.1} parent=1 // pred_check_branch
      %64 = sbr.rel (%p62) target = $region33
    $region32: #{tpu_custom_call.1} parent=1 // pred_region
      %65 = vst [vmem:[#allocation2] sm:$0xff] 0.0
      %66 = vst [vmem:[#allocation2 + $0x8] sm:$0xff] 0.0
      %67 = vst [vmem:[#allocation2 + $0x10] sm:$0xff] 0.0
      %68 = vst [vmem:[#allocation2 + $0x18] sm:$0xff] 0.0
      %69 = vst [vmem:[#allocation2 + $0x20] sm:$0xff] 0.0
      %70 = vst [vmem:[#allocation2 + $0x28] sm:$0xff] 0.0
      %71 = vst [vmem:[#allocation2 + $0x30] sm:$0xff] 0.0
      %72 = vst [vmem:[#allocation2 + $0x38] sm:$0xff] 0.0
      %73 = vst [vmem:[#allocation2 + $0x40] sm:$0xff] 0.0
      %74 = vst [vmem:[#allocation2 + $0x48] sm:$0xff] 0.0
      %75 = vst [vmem:[#allocation2 + $0x50] sm:$0xff] 0.0
      %76 = vst [vmem:[#allocation2 + $0x58] sm:$0xff] 0.0
      %77 = vst [vmem:[#allocation2 + $0x60] sm:$0xff] 0.0
      %78 = vst [vmem:[#allocation2 + $0x68] sm:$0xff] 0.0
      %79 = vst [vmem:[#allocation2 + $0x70] sm:$0xff] 0.0
      %80 = vst [vmem:[#allocation2 + $0x78] sm:$0xff] 0.0
    $region33: #{tpu_custom_call.1} parent=1 // pred_fallthru
      _
    %v81 = vld [vmem:[#allocation2] sm:$0xff]
    %v82 = vld [vmem:[#allocation2 + $0x8] sm:$0xff]
    %v83 = vld [vmem:[#allocation2 + $0x10] sm:$0xff]
    %v84 = vld [vmem:[#allocation2 + $0x18] sm:$0xff]
    %v85 = vld [vmem:[#allocation2 + $0x20] sm:$0xff]
    %v86 = vld [vmem:[#allocation2 + $0x28] sm:$0xff]
    %v87 = vld [vmem:[#allocation2 + $0x30] sm:$0xff]
    %v88 = vld [vmem:[#allocation2 + $0x38] sm:$0xff]
    %v89 = vld [vmem:[#allocation2 + $0x40] sm:$0xff]
    %v90 = vld [vmem:[#allocation2 + $0x48] sm:$0xff]
    %v91 = vld [vmem:[#allocation2 + $0x50] sm:$0xff]
    %v92 = vld [vmem:[#allocation2 + $0x58] sm:$0xff]
    %v93 = vld [vmem:[#allocation2 + $0x60] sm:$0xff]
    %v94 = vld [vmem:[#allocation2 + $0x68] sm:$0xff]
    %v95 = vld [vmem:[#allocation2 + $0x70] sm:$0xff]
    %v96 = vld [vmem:[#allocation2 + $0x78] sm:$0xff]
    %v97 = vld [vmem:[#allocation5] sm:$0xf]
    %v98 = vld [vmem:[#allocation5 + $0x4] sm:$0xf]
    %v99 = vld [vmem:[#allocation5 + $0x8] sm:$0xf]
    %v100 = vld [vmem:[#allocation5 + $0xc] sm:$0xf]
    %v101 = vld [vmem:[#allocation5 + $0x10] sm:$0xf]
    %v102 = vld [vmem:[#allocation5 + $0x14] sm:$0xf]
    %v103 = vld [vmem:[#allocation5 + $0x18] sm:$0xf]
    %v104 = vld [vmem:[#allocation5 + $0x1c] sm:$0xf]
    %v105 = vld [vmem:[#allocation5 + $0x20] sm:$0xf]
    %v106 = vld [vmem:[#allocation5 + $0x24] sm:$0xf]
    %v107 = vld [vmem:[#allocation5 + $0x28] sm:$0xf]
    %v108 = vld [vmem:[#allocation5 + $0x2c] sm:$0xf]
    %v109 = vld [vmem:[#allocation5 + $0x30] sm:$0xf]
    %v110 = vld [vmem:[#allocation5 + $0x34] sm:$0xf]
    %v111 = vld [vmem:[#allocation5 + $0x38] sm:$0xf]
    %v112 = vld [vmem:[#allocation5 + $0x3c] sm:$0xf]
    %v113 = vld [vmem:[#allocation8] sm:$0xf]
    %v114 = vld [vmem:[#allocation8 + $0x4] sm:$0xf]
    %v115 = vld [vmem:[#allocation8 + $0x8] sm:$0xf]
    %v116 = vld [vmem:[#allocation8 + $0xc] sm:$0xf]
    %v117 = vld [vmem:[#allocation8 + $0x10] sm:$0xf]
    %v118 = vld [vmem:[#allocation8 + $0x14] sm:$0xf]
    %v119 = vld [vmem:[#allocation8 + $0x18] sm:$0xf]
    %v120 = vld [vmem:[#allocation8 + $0x1c] sm:$0xf]
    %v121 = vld [vmem:[#allocation8 + $0x20] sm:$0xf]
    %v122 = vld [vmem:[#allocation8 + $0x24] sm:$0xf]
    %v123 = vld [vmem:[#allocation8 + $0x28] sm:$0xf]
    %v124 = vld [vmem:[#allocation8 + $0x2c] sm:$0xf]
    %v125 = vld [vmem:[#allocation8 + $0x30] sm:$0xf]
    %v126 = vld [vmem:[#allocation8 + $0x34] sm:$0xf]
    %v127 = vld [vmem:[#allocation8 + $0x38] sm:$0xf]
    %v128 = vld [vmem:[#allocation8 + $0x3c] sm:$0xf]
    %v145 = vunpack.c.l.b16 %v97
    %v146 = vunpack.c.l.b16 %v98
    %v147 = vunpack.c.l.b16 %v99
    %v148 = vunpack.c.l.b16 %v100
    %v149 = vunpack.c.l.b16 %v101
    %v150 = vunpack.c.l.b16 %v102
    %v151 = vunpack.c.l.b16 %v103
    %v152 = vunpack.c.l.b16 %v104
    %v153 = vunpack.c.l.b16 %v105
    %v154 = vunpack.c.l.b16 %v106
    %v155 = vunpack.c.l.b16 %v107
    %v156 = vunpack.c.l.b16 %v108
    %v157 = vunpack.c.l.b16 %v109
    %v158 = vunpack.c.l.b16 %v110
    %v159 = vunpack.c.l.b16 %v111
    %v160 = vunpack.c.l.b16 %v112
    %v161 = vpack.c.b16 %v146, %v145
    %v162 = vpack.c.b16 %v148, %v147
    %v163 = vpack.c.b16 %v150, %v149
    %v164 = vpack.c.b16 %v152, %v151
    %v165 = vpack.c.b16 %v154, %v153
    %v166 = vpack.c.b16 %v156, %v155
    %v167 = vpack.c.b16 %v158, %v157
    %v168 = vpack.c.b16 %v160, %v159
    %v193 = vunpack.c.l.b16 %v113
    %v194 = vunpack.c.l.b16 %v114
    %v195 = vunpack.c.l.b16 %v115
    %v196 = vunpack.c.l.b16 %v116
    %v197 = vunpack.c.l.b16 %v117
    %v198 = vunpack.c.l.b16 %v118
    %v199 = vunpack.c.l.b16 %v119
    %v200 = vunpack.c.l.b16 %v120
    %v201 = vunpack.c.l.b16 %v121
    %v202 = vunpack.c.l.b16 %v122
    %v203 = vunpack.c.l.b16 %v123
    %v204 = vunpack.c.l.b16 %v124
    %v205 = vunpack.c.l.b16 %v125
    %v206 = vunpack.c.l.b16 %v126
    %v207 = vunpack.c.l.b16 %v127
    %v208 = vunpack.c.l.b16 %v128
    %v209 = vpack.c.b16 %v194, %v193
    %v210 = vpack.c.b16 %v196, %v195
    %v211 = vpack.c.b16 %v198, %v197
    %v212 = vpack.c.b16 %v200, %v199
    %v213 = vpack.c.b16 %v202, %v201
    %v214 = vpack.c.b16 %v204, %v203
    %v215 = vpack.c.b16 %v206, %v205
    %v216 = vpack.c.b16 %v208, %v207
    %225 = vmatpush.bf16.msra.mxu0 %v216
    %226 = vmatpush.bf16.msra.mxu0 %v215
    %227 = vmatpush.bf16.msra.mxu0 %v214
    %228 = vmatpush.bf16.msra.mxu0 %v213
    %229 = vmatpush.bf16.msra.mxu0 %v212
    %230 = vmatpush.bf16.msra.mxu0 %v211
    %231 = vmatpush.bf16.msra.mxu0 %v210
    %232 = vmatpush.bf16.msra.mxu0 %v209
    %233 = vmatmul.bf16.gmra.mxu0 %v161
    %v234 = vpop.f32.mrf.mxu0
    %v235 = vadd.f32 0.0, %v234
    %v236 = vpop.f32.mrf.mxu0
    %v237 = vadd.f32 0.0, %v236
    %238 = vmatmul.bf16.gmra.mxu0 %v162
    %v239 = vpop.f32.mrf.mxu0
    %v240 = vadd.f32 0.0, %v239
    %v241 = vpop.f32.mrf.mxu0
    %v242 = vadd.f32 0.0, %v241
    %243 = vmatmul.bf16.gmra.mxu0 %v163
    %v244 = vpop.f32.mrf.mxu0
    %v245 = vadd.f32 0.0, %v244
    %v246 = vpop.f32.mrf.mxu0
    %v247 = vadd.f32 0.0, %v246
    %248 = vmatmul.bf16.gmra.mxu0 %v164
    %v249 = vpop.f32.mrf.mxu0
    %v250 = vadd.f32 0.0, %v249
    %v251 = vpop.f32.mrf.mxu0
    %v252 = vadd.f32 0.0, %v251
    %253 = vmatmul.bf16.gmra.mxu0 %v165
    %v254 = vpop.f32.mrf.mxu0
    %v255 = vadd.f32 0.0, %v254
    %v256 = vpop.f32.mrf.mxu0
    %v257 = vadd.f32 0.0, %v256
    %258 = vmatmul.bf16.gmra.mxu0 %v166
    %v259 = vpop.f32.mrf.mxu0
    %v260 = vadd.f32 0.0, %v259
    %v261 = vpop.f32.mrf.mxu0
    %v262 = vadd.f32 0.0, %v261
    %263 = vmatmul.bf16.gmra.mxu0 %v167
    %v264 = vpop.f32.mrf.mxu0
    %v265 = vadd.f32 0.0, %v264
    %v266 = vpop.f32.mrf.mxu0
    %v267 = vadd.f32 0.0, %v266
    %268 = vmatmul.bf16.gmra.mxu0 %v168
    %v269 = vpop.f32.mrf.mxu0
    %v270 = vadd.f32 0.0, %v269
    %v271 = vpop.f32.mrf.mxu0
    %v272 = vadd.f32 0.0, %v271
    %273 = vdwg.mxu0
    %v274 = vadd.f32 %v81, %v235
    %v275 = vadd.f32 %v82, %v237
    %v276 = vadd.f32 %v83, %v240
    %v277 = vadd.f32 %v84, %v242
    %v278 = vadd.f32 %v85, %v245
    %v279 = vadd.f32 %v86, %v247
    %v280 = vadd.f32 %v87, %v250
    %v281 = vadd.f32 %v88, %v252
    %v282 = vadd.f32 %v89, %v255
    %v283 = vadd.f32 %v90, %v257
    %v284 = vadd.f32 %v91, %v260
    %v285 = vadd.f32 %v92, %v262
    %v286 = vadd.f32 %v93, %v265
    %v287 = vadd.f32 %v94, %v267
    %v288 = vadd.f32 %v95, %v270
    %v289 = vadd.f32 %v96, %v272
    %290 = vst [vmem:[#allocation2] sm:$0xff] %v274
    %291 = vst [vmem:[#allocation2 + $0x8] sm:$0xff] %v275
    %292 = vst [vmem:[#allocation2 + $0x10] sm:$0xff] %v276
    %293 = vst [vmem:[#allocation2 + $0x18] sm:$0xff] %v277
    %294 = vst [vmem:[#allocation2 + $0x20] sm:$0xff] %v278
    %295 = vst [vmem:[#allocation2 + $0x28] sm:$0xff] %v279
    %296 = vst [vmem:[#allocation2 + $0x30] sm:$0xff] %v280
    %297 = vst [vmem:[#allocation2 + $0x38] sm:$0xff] %v281
    %298 = vst [vmem:[#allocation2 + $0x40] sm:$0xff] %v282
    %299 = vst [vmem:[#allocation2 + $0x48] sm:$0xff] %v283
    %300 = vst [vmem:[#allocation2 + $0x50] sm:$0xff] %v284
    %301 = vst [vmem:[#allocation2 + $0x58] sm:$0xff] %v285
    %302 = vst [vmem:[#allocation2 + $0x60] sm:$0xff] %v286
    %303 = vst [vmem:[#allocation2 + $0x68] sm:$0xff] %v287
    %304 = vst [vmem:[#allocation2 + $0x70] sm:$0xff] %v288
    %305 = vst [vmem:[#allocation2 + $0x78] sm:$0xff] %v289
    // Predicated region
    $region34: #{tpu_custom_call.1} parent=1 // pred_check
      %p306 = pneg %p54
    $region35: #{tpu_custom_call.1} parent=1 // pred_check_branch
      %308 = sbr.rel (%p306) target = $region37
    $region36: #{tpu_custom_call.1} parent=1 // pred_region
      %v309 = vld [vmem:[#allocation2] sm:$0xff]
      %v310 = vld [vmem:[#allocation2 + $0x8] sm:$0xff]
      %v311 = vld [vmem:[#allocation2 + $0x10] sm:$0xff]
      %v312 = vld [vmem:[#allocation2 + $0x18] sm:$0xff]
      %v313 = vld [vmem:[#allocation2 + $0x20] sm:$0xff]
      %v314 = vld [vmem:[#allocation2 + $0x28] sm:$0xff]
      %v315 = vld [vmem:[#allocation2 + $0x30] sm:$0xff]
      %v316 = vld [vmem:[#allocation2 + $0x38] sm:$0xff]
      %v317 = vld [vmem:[#allocation2 + $0x40] sm:$0xff]
      %v318 = vld [vmem:[#allocation2 + $0x48] sm:$0xff]
      %v319 = vld [vmem:[#allocation2 + $0x50] sm:$0xff]
      %v320 = vld [vmem:[#allocation2 + $0x58] sm:$0xff]
      %v321 = vld [vmem:[#allocation2 + $0x60] sm:$0xff]
      %v322 = vld [vmem:[#allocation2 + $0x68] sm:$0xff]
      %v323 = vld [vmem:[#allocation2 + $0x70] sm:$0xff]
      %v324 = vld [vmem:[#allocation2 + $0x78] sm:$0xff]
      %v325 = vpack.c.bf16 %v309, %v309
      %v326 = vpack.c.bf16 %v310, %v310
      %v327 = vpack.c.bf16 %v311, %v311
      %v328 = vpack.c.bf16 %v312, %v312
      %v329 = vpack.c.bf16 %v313, %v313
      %v330 = vpack.c.bf16 %v314, %v314
      %v331 = vpack.c.bf16 %v315, %v315
      %v332 = vpack.c.bf16 %v316, %v316
      %v333 = vpack.c.bf16 %v317, %v317
      %v334 = vpack.c.bf16 %v318, %v318
      %v335 = vpack.c.bf16 %v319, %v319
      %v336 = vpack.c.bf16 %v320, %v320
      %v337 = vpack.c.bf16 %v321, %v321
      %v338 = vpack.c.bf16 %v322, %v322
      %v339 = vpack.c.bf16 %v323, %v323
      %v340 = vpack.c.bf16 %v324, %v324
      %341 = vst [vmem:[#allocation10] sm:$0xf] %v325
      %342 = vst [vmem:[#allocation10 + $0x4] sm:$0xf] %v326
      %343 = vst [vmem:[#allocation10 + $0x8] sm:$0xf] %v327
      %344 = vst [vmem:[#allocation10 + $0xc] sm:$0xf] %v328
      %345 = vst [vmem:[#allocation10 + $0x10] sm:$0xf] %v329
      %346 = vst [vmem:[#allocation10 + $0x14] sm:$0xf] %v330
      %347 = vst [vmem:[#allocation10 + $0x18] sm:$0xf] %v331
      %348 = vst [vmem:[#allocation10 + $0x1c] sm:$0xf] %v332
      %349 = vst [vmem:[#allocation10 + $0x20] sm:$0xf] %v333
      %350 = vst [vmem:[#allocation10 + $0x24] sm:$0xf] %v334
      %351 = vst [vmem:[#allocation10 + $0x28] sm:$0xf] %v335
      %352 = vst [vmem:[#allocation10 + $0x2c] sm:$0xf] %v336
      %353 = vst [vmem:[#allocation10 + $0x30] sm:$0xf] %v337
      %354 = vst [vmem:[#allocation10 + $0x34] sm:$0xf] %v338
      %355 = vst [vmem:[#allocation10 + $0x38] sm:$0xf] %v339
      %356 = vst [vmem:[#allocation10 + $0x3c] sm:$0xf] %v340
      %v357 = vld [vmem:[#allocation3] sm:$0x1]
      %v358 = vadd.f32 %v309, %v310
      %v359 = vadd.f32 %v358, %v311
      %v360 = vadd.f32 %v359, %v312
      %v361 = vadd.f32 %v360, %v313
      %v362 = vadd.f32 %v361, %v314
      %v363 = vadd.f32 %v362, %v315
      %v364 = vadd.f32 %v363, %v316
      %v365 = vadd.f32 %v364, %v317
      %v366 = vadd.f32 %v365, %v318
      %v367 = vadd.f32 %v366, %v319
      %v368 = vadd.f32 %v367, %v320
      %v369 = vadd.f32 %v368, %v321
      %v370 = vadd.f32 %v369, %v322
      %v371 = vadd.f32 %v370, %v323
      %v372 = vadd.f32 %v371, %v324
      %v373 = vrot.slane %v372, 4
      %v374 = vadd.f32 %v372, %v373
      %v375 = vrot.slane %v374, 2
      %v376 = vadd.f32 %v374, %v375
      %v377 = vrot.slane %v376, 1
      %v378 = vadd.f32 %v376, %v377
      %v379 = vadd.f32 %v357, %v378
      %380 = vst [vmem:[#allocation3] sm:$0x1] %v379
      %v381 = vld [vmem:[#allocation4] sm:$0x1]
      %v382 = vmul.f32 %v309, %v309
      %v383 = vmul.f32 %v310, %v310
      %v384 = vmul.f32 %v311, %v311
      %v385 = vmul.f32 %v312, %v312
      %v386 = vmul.f32 %v313, %v313
      %v387 = vmul.f32 %v314, %v314
      %v388 = vmul.f32 %v315, %v315
      %v389 = vmul.f32 %v316, %v316
      %v390 = vmul.f32 %v317, %v317
      %v391 = vmul.f32 %v318, %v318
      %v392 = vmul.f32 %v319, %v319
      %v393 = vmul.f32 %v320, %v320
      %v394 = vmul.f32 %v321, %v321
      %v395 = vmul.f32 %v322, %v322
      %v396 = vmul.f32 %v323, %v323
      %v397 = vmul.f32 %v324, %v324
      %v398 = vadd.f32 %v382, %v383
      %v399 = vadd.f32 %v398, %v384
      %v400 = vadd.f32 %v399, %v385
      %v401 = vadd.f32 %v400, %v386
      %v402 = vadd.f32 %v401, %v387
      %v403 = vadd.f32 %v402, %v388
      %v404 = vadd.f32 %v403, %v389
      %v405 = vadd.f32 %v404, %v390
      %v406 = vadd.f32 %v405, %v391
      %v407 = vadd.f32 %v406, %v392
      %v408 = vadd.f32 %v407, %v393
      %v409 = vadd.f32 %v408, %v394
      %v410 = vadd.f32 %v409, %v395
      %v411 = vadd.f32 %v410, %v396
      %v412 = vadd.f32 %v411, %v397
      %v413 = vrot.slane %v412, 4
      %v414 = vadd.f32 %v412, %v413
      %v415 = vrot.slane %v414, 2
      %v416 = vadd.f32 %v414, %v415
      %v417 = vrot.slane %v416, 1
      %v418 = vadd.f32 %v416, %v417
      %v419 = vadd.f32 %v381, %v418
      %420 = vst [vmem:[#allocation4] sm:$0x1] %v419
    $region37: #{tpu_custom_call.1} parent=1 // pred_fallthru
      _
    // Predicated region
    $region38: #{tpu_custom_call.1} parent=1 // pred_check
      _
    $region39: #{tpu_custom_call.1} parent=1 // pred_check_branch
      %422 = sbr.rel (%p56) target = $region41
    $region40: #{tpu_custom_call.1} parent=1 // pred_region
      %v423 = vld [vmem:[#allocation3] sm:$0x1]
      %v424 = vmul.f32 %v423, 0.0078125
      %v425 = vld [vmem:[#allocation4] sm:$0x1]
      %v426 = vmul.f32 %v425, 0.0078125
      %v427 = vmul.f32 %v424, %v424
      %v428 = vsub.f32 %v426, %v427
      %v429 = vadd.f32 %v428, 1e-05
      %v430 = vrsqrt.pop %v429
      %v431 = vmul.f32 %v430, %v429
      %v432 = vmul.f32 %v431, %v430
      %v433 = vmul.f32 0.5, %v432
      %v434 = vsub.f32 1.5, %v433
      %v435 = vmul.f32 %v430, %v434
      %vm436 = vweird.f32 %v429
      %vm437 = vweird.f32 %v430
      %vm438 = vmor %vm436, %vm437
      %v439 = vsel %vm438, %v430, %v435
      %v440 = vld [vmem:[%s2] sm:$0x1]
      %v441 = vmul.f32 %v440, %v439
      %442 = vst [vmem:[#allocation11] sm:$0x1] %v441
      %v443 = vld [vmem:[%s3] sm:$0x1]
      %v444 = vmul.f32 %v424, %v441
      %v445 = vsub.f32 %v443, %v444
      %446 = vst [vmem:[#allocation13] sm:$0x1] %v445
    $region41: #{tpu_custom_call.1} parent=1 // pred_fallthru
      _
    // Predicated region
    $region42: #{tpu_custom_call.1} parent=1 // pred_check
      _
    $region43: #{tpu_custom_call.1} parent=1 // pred_check_branch
      %448 = sbr.rel (0) target = $region45
    $region44: #{tpu_custom_call.1} parent=1 // pred_region
      %450 = vsyncadd [#allocation7], 0
      %s451 = sshll.u32 [#allocation10], 4
      %s452 = int_to_ptr.vmem [resolvable:$true] %s451
      %s453 = sshll.u32 %s4, 4
      %s454 = int_to_ptr.hbm [resolvable:$true] %s453
      %459 = dma.vmem_to_hbm [thread:$0]  %s452, 1024, %s454, [#allocation7], 64, 64, 4
    $region45: #{tpu_custom_call.1} parent=1 // pred_fallthru
      _
    // Predicated region
    $region46: #{tpu_custom_call.1} parent=1 // pred_check
      _
    $region47: #{tpu_custom_call.1} parent=1 // pred_check_branch
      %461 = sbr.rel (0) target = $region49
    $region48: #{tpu_custom_call.1} parent=1 // pred_region
      %463 = vsyncadd [#allocation12], 0
      %s465 = sshll.u32 [#allocation11], 4
      %s466 = int_to_ptr.vmem [resolvable:$true] %s465
      %s467 = sshll.u32 %s5, 4
      %s468 = int_to_ptr.hbm [resolvable:$true] %s467
      %470 = dma.vmem_to_hbm [thread:$0]  %s466, 16, %s468, [#allocation12]
    $region49: #{tpu_custom_call.1} parent=1 // pred_fallthru
      _
    // Predicated region
    $region50: #{tpu_custom_call.1} parent=1 // pred_check
      _
    $region51: #{tpu_custom_call.1} parent=1 // pred_check_branch
      %472 = sbr.rel (0) target = $region53
    $region52: #{tpu_custom_call.1} parent=1 // pred_region
      %474 = vsyncadd [#allocation12], 0
      %s476 = sshll.u32 [#allocation13], 4
      %s477 = int_to_ptr.vmem [resolvable:$true] %s476
      %s478 = sshll.u32 %s6, 4
      %s479 = int_to_ptr.hbm [resolvable:$true] %s478
      %481 = dma.vmem_to_hbm [thread:$0]  %s477, 16, %s479, [#allocation12]
    $region53: #{tpu_custom_call.1} parent=1 // pred_fallthru
      _
    // Predicated region
    $region54: #{tpu_custom_call.1} parent=1 // pred_check
      _
    $region55: #{tpu_custom_call.1} parent=1 // pred_check_branch
      %483 = sbr.rel (0) target = $region57
    $region56: #{tpu_custom_call.1} parent=1 // pred_region
      %485 = dma.done [#allocation7], 1024
    $region57: #{tpu_custom_call.1} parent=1 // pred_fallthru
      _
    // Predicated region
    $region58: #{tpu_custom_call.1} parent=1 // pred_check
      _
    $region59: #{tpu_custom_call.1} parent=1 // pred_check_branch
      %487 = sbr.rel (0) target = $region61
    $region60: #{tpu_custom_call.1} parent=1 // pred_region
      %489 = dma.done [#allocation12], 16
    $region61: #{tpu_custom_call.1} parent=1 // pred_fallthru
      _
    // Predicated region
    $region62: #{tpu_custom_call.1} parent=1 // pred_check
      _
    $region63: #{tpu_custom_call.1} parent=1 // pred_check_branch
      %491 = sbr.rel (0) target = $region65
    $region64: #{tpu_custom_call.1} parent=1 // pred_region
      %493 = dma.done [#allocation12], 16
    $region65: #{tpu_custom_call.1} parent=1 // pred_fallthru
      _
    %494 = vsyncpa [#allocation6], 1
    %495 = vsyncpa [#allocation9], 1
    %496 = vsyncpa [#allocation7], 1
    %497 = vsyncpa [#allocation12], 1

</llo_original>
